<compile_context>
chip_gen: v7x
topology: tpu7x:2x2x1
jax: 0.10.0
libtpu: 0.0.40
codegen_flags: <defaults>
</compile_context>

<pallas_src>
import jax
import jax.numpy as jnp
import numpy as np
from jax.experimental import pallas as pl
from jax.experimental.pallas import tpu as pltpu

NUM_CLASSES = 5
_LANES = 128
_SUBLANES = 8
_MAX_TILE_ROWS = 8192   # (8192,128) f32 = 4 MiB per input buffer
_NUM_SUMS = 5           # sum(p), sum(t), sum(p^2), sum(t^2), sum(p*t)


def _cdiv(a, b):
    return (a + b - 1) // b


def _make_qwk_kernel(tile_rows, n_classes):
    hi = float(n_classes - 1)
    n_chunks = tile_rows // _SUBLANES
    unroll = min(8, max(n_chunks, 1))

    def kernel(pred_ref, targ_ref, acc_ref):
        i = pl.program_id(1)

        @pl.when(i == 0)
        def _init():
            acc_ref[...] = jnp.zeros_like(acc_ref)

        def body(c, carry):
            sp, st, spp, stt, spt = carry
            r = pl.multiple_of(c * _SUBLANES, _SUBLANES)
            # Cast to f32 on the VPU (inputs may be bf16/f16/f32), round like
            # torch.round (half-to-even) and clip to the fixed class range.
            # TODO(synk): sklearn infers the label set from the data at
            # runtime; here the class set is fixed to {0..n_classes-1} and
            # targets are rounded like predictions.
            p = jnp.clip(
                jnp.round(pred_ref[pl.ds(r, _SUBLANES), :].astype(jnp.float32)),
                0.0, hi)
            t = jnp.clip(
                jnp.round(targ_ref[pl.ds(r, _SUBLANES), :].astype(jnp.float32)),
                0.0, hi)
            return (sp + p, st + t, spp + p * p, stt + t * t, spt + p * t)

        zero = jnp.zeros((_SUBLANES, _LANES), jnp.float32)
        sp, st, spp, stt, spt = jax.lax.fori_loop(
            0, n_chunks, body, (zero, zero, zero, zero, zero), unroll=unroll)

        # One small accumulator update per tile (resident output block).
        acc_ref[0, 0] += sp
        acc_ref[0, 1] += st
        acc_ref[0, 2] += spp
        acc_ref[0, 3] += stt
        acc_ref[0, 4] += spt

    return kernel


def quadratic_kappa(output, target, num_classes=NUM_CLASSES):
    """Pallas equivalent of QK().forward(output, target)."""
    pred = jnp.ravel(jnp.asarray(output))
    targ = jnp.ravel(jnp.asarray(target))
    assert pred.shape == targ.shape, "output/target must have the same size"
    n = int(pred.shape[0])
    hi = float(num_classes - 1)
    # TODO(synk): torch/sklearn do the final combine in float64; here it is
    # float32 unless the caller enabled jax x64.
    ftype = jnp.float64 if jax.config.jax_enable_x64 else jnp.float32
    if n == 0:
        return jnp.asarray(jnp.nan, ftype)

    # Lane alignment: reshape to (rows, 128).  Free (zero-copy) when
    # N % 128 == 0; otherwise one minimal (<128-element) zero pad is needed.
    rem = (-n) % _LANES
    if rem:
        pred = jnp.pad(pred, (0, rem))
        targ = jnp.pad(targ, (0, rem))
    rows = (n + rem) // _LANES
    pred2d = pred.reshape(rows, _LANES)
    targ2d = targ.reshape(rows, _LANES)

    # 2-way core split only when each core gets >= 2 full max-size tiles
    # (useful on v7x's two TensorCores; costs nothing elsewhere since the
    # split adds no padding and no extra DMA).
    n_par = 2 if rows >= 4 * _MAX_TILE_ROWS else 1
    rows_per_core = (rows // n_par) // _SUBLANES * _SUBLANES

    if rows_per_core >= _SUBLANES:
        # Tight tiling: tiles divide rows_per_core (almost) exactly; no padded
        # tiles are ever read from HBM.
        n_tiles = _cdiv(rows_per_core, _MAX_TILE_ROWS)
        tile_rows = (rows_per_core // n_tiles) // _SUBLANES * _SUBLANES
        tiles_per_core = rows_per_core // tile_rows
        covered = n_par * tiles_per_core * tile_rows

        kernel = _make_qwk_kernel(tile_rows, num_classes)
        partials = pl.pallas_call(
            kernel,
            out_shape=jax.ShapeDtypeStruct(
                (n_par, _NUM_SUMS, _SUBLANES, _LANES), jnp.float32),
            grid_spec=pltpu.PrefetchScalarGridSpec(
                num_scalar_prefetch=0,
                grid=(n_par, tiles_per_core),
                in_specs=[
                    pl.BlockSpec((tile_rows, _LANES),
                                 lambda c, i: (c * tiles_per_core + i, 0)),
                    pl.BlockSpec((tile_rows, _LANES),
                                 lambda c, i: (c * tiles_per_core + i, 0)),
                ],
                out_specs=pl.BlockSpec(
                    (1, _NUM_SUMS, _SUBLANES, _LANES),
                    lambda c, i: (c, 0, 0, 0)),
            ),
            compiler_params=pltpu.CompilerParams(
                dimension_semantics=("parallel", "arbitrary"),
                vmem_limit_bytes=32 * 1024 * 1024,
            ),
        )(pred2d, targ2d)
        kernel_sums = jnp.sum(partials.astype(ftype), axis=(0, 2, 3))
    else:
        # Input too small for even one tile: handle everything in the tail.
        covered = 0
        kernel_sums = jnp.zeros((_NUM_SUMS,), ftype)

    # Sub-tile remainder (< one tile of rows, incl. the zero lane-padding):
    # tiny slice, reduced with plain jnp.  Zeros contribute nothing.
    tp = jnp.clip(jnp.round(pred2d[covered:].astype(jnp.float32)), 0.0, hi)
    tt = jnp.clip(jnp.round(targ2d[covered:].astype(jnp.float32)), 0.0, hi)
    tail_sums = jnp.stack(
        [tp.sum(), tt.sum(), (tp * tp).sum(), (tt * tt).sum(),
         (tp * tt).sum()]).astype(ftype)

    s = kernel_sums + tail_sums
    sp1, st1, sp2, st2, spt = s[0], s[1], s[2], s[3], s[4]
    nf = jnp.asarray(n, ftype)
    num = sp2 - 2.0 * spt + st2
    den = sp2 + st2 - 2.0 * sp1 * st1 / nf
    safe_den = jnp.where(den == 0.0, jnp.asarray(1.0, ftype), den)
    # sklearn returns NaN (with a warning) when expected disagreement is zero.
    return jnp.where(den == 0.0, jnp.asarray(jnp.nan, ftype),
                     1.0 - num / safe_den)


def _ref_quadratic_kappa(output, target, num_classes=NUM_CLASSES):
    """Pure-numpy reference (cohen_kappa_score with fixed label set 0..K-1)."""
    hi = num_classes - 1
    pred = np.clip(np.round(np.asarray(output, np.float64)), 0,
                   hi).astype(np.int64).ravel()
    targ = np.clip(np.round(np.asarray(target, np.float64)), 0,
                   hi).astype(np.int64).ravel()
    n = pred.shape[0]
    C = np.zeros((num_classes, num_classes), np.float64)
    np.add.at(C, (pred, targ), 1.0)
    idx = np.arange(num_classes, dtype=np.float64)
    W = (idx[:, None] - idx[None, :]) ** 2
    E = np.outer(C.sum(1), C.sum(0)) / n
    den = (W * E).sum()
    return np.nan if den == 0.0 else 1.0 - (W * C).sum() / den


if __name__ == "__main__":
    key = jax.random.PRNGKey(0)
    # 8000 exercises the ragged (lane-pad + jnp tail) path; 8192 the fully
    # copy-free, tile-aligned path.
    for N in (8000, 8192):
        key, k1, k2 = jax.random.split(key, 3)
        target = jax.random.randint(k1, (N,), 0, NUM_CLASSES).astype(jnp.float32)
        output = target + 0.8 * jax.random.normal(k2, (N,), dtype=jnp.float32)

        kappa = jax.block_until_ready(quadratic_kappa(output, target))
        ref = _ref_quadratic_kappa(np.asarray(output), np.asarray(target))
        np.testing.assert_allclose(float(kappa), ref, rtol=1e-5, atol=1e-5)

    print("KERNEL_OK")
</pallas_src>

<mosaic_0001>
module attributes {stable_mosaic.version = 11 : i64} {
  func.func @kernel(%arg0: i32, %arg1: i32, %arg2: memref<56x128xf32, #tpu.memory_space<vmem>>, %arg3: memref<56x128xf32, #tpu.memory_space<vmem>>, %arg4: memref<1x5x8x128xf32, #tpu.memory_space<vmem>>) attributes {dimension_semantics = [#tpu.dimension_semantics<parallel>, #tpu.dimension_semantics<arbitrary>], iteration_bounds = array<i64: 1, 1>, scalar_prefetch = 0 : i64, scratch_operands = 0 : i64, tpu.core_type = #tpu.core_type<tc>, window_params = [{transform_indices = @transform_0, window_bounds = array<i64: 56, 128>}, {transform_indices = @transform_1, window_bounds = array<i64: 56, 128>}, {transform_indices = @transform_2, window_bounds = array<i64: 1, 5, 8, 128>}]} {
    %c0_i32 = arith.constant 0 : i32
    %0 = arith.cmpi eq, %arg1, %c0_i32 : i32
    %1 = arith.extui %0 : i1 to i32
    %c0_i32_0 = arith.constant 0 : i32
    %2 = arith.cmpi ne, %1, %c0_i32_0 : i32
    scf.if %2 {
      %cst_85 = arith.constant 0.000000e+00 : f32
      %202 = vector.broadcast %cst_85 : f32 to vector<1x5x8x128xf32>
      %c0_86 = arith.constant 0 : index
      %c0_87 = arith.constant 0 : index
      %c0_88 = arith.constant 0 : index
      %c0_89 = arith.constant 0 : index
      %203 = vector.load %arg4[%c0_86, %c0_87, %c0_88, %c0_89] : memref<1x5x8x128xf32, #tpu.memory_space<vmem>>, vector<1x5x8x128xf32>
      tpu.vector_store %arg4[%c0_86, %c0_87, %c0_88, %c0_89], %202 {strides = array<i32>} : memref<1x5x8x128xf32, #tpu.memory_space<vmem>>, vector<1x5x8x128xf32>,
    } else {
    }
    %cst = arith.constant 0.000000e+00 : f32
    %3 = vector.broadcast %cst : f32 to vector<8x128xf32>
    %c0_i32_1 = arith.constant 0 : i32
    %c8_i32 = arith.constant 8 : i32
    %4 = arith.muli %c0_i32_1, %c8_i32 : i32
    %5 = tpu.assume_multiple %4, 8 : i32
    %6 = arith.index_cast %5 : i32 to index
    %c0 = arith.constant 0 : index
    %7 = vector.load %arg2[%6, %c0] : memref<56x128xf32, #tpu.memory_space<vmem>>, vector<8x128xf32>
    %8 = math.roundeven %7 : vector<8x128xf32>
    %cst_2 = arith.constant 0.000000e+00 : f32
    %cst_3 = arith.constant 4.000000e+00 : f32
    %9 = vector.broadcast %cst_2 : f32 to vector<8x128xf32>
    %10 = arith.maximumf %9, %8 : vector<8x128xf32>
    %11 = vector.broadcast %cst_3 : f32 to vector<8x128xf32>
    %12 = arith.minimumf %11, %10 : vector<8x128xf32>
    %13 = arith.index_cast %5 : i32 to index
    %c0_4 = arith.constant 0 : index
    %14 = vector.load %arg3[%13, %c0_4] : memref<56x128xf32, #tpu.memory_space<vmem>>, vector<8x128xf32>
    %15 = math.roundeven %14 : vector<8x128xf32>
    %cst_5 = arith.constant 0.000000e+00 : f32
    %cst_6 = arith.constant 4.000000e+00 : f32
    %16 = vector.broadcast %cst_5 : f32 to vector<8x128xf32>
    %17 = arith.maximumf %16, %15 : vector<8x128xf32>
    %18 = vector.broadcast %cst_6 : f32 to vector<8x128xf32>
    %19 = arith.minimumf %18, %17 : vector<8x128xf32>
    %20 = arith.addf %3, %12 : vector<8x128xf32>
    %21 = arith.addf %3, %19 : vector<8x128xf32>
    %22 = arith.mulf %12, %12 : vector<8x128xf32>
    %23 = arith.addf %3, %22 : vector<8x128xf32>
    %24 = arith.mulf %19, %19 : vector<8x128xf32>
    %25 = arith.addf %3, %24 : vector<8x128xf32>
    %26 = arith.mulf %12, %19 : vector<8x128xf32>
    %27 = arith.addf %3, %26 : vector<8x128xf32>
    %c1_i32 = arith.constant 1 : i32
    %c8_i32_7 = arith.constant 8 : i32
    %28 = arith.muli %c1_i32, %c8_i32_7 : i32
    %29 = tpu.assume_multiple %28, 8 : i32
    %30 = arith.index_cast %29 : i32 to index
    %c0_8 = arith.constant 0 : index
    %31 = vector.load %arg2[%30, %c0_8] : memref<56x128xf32, #tpu.memory_space<vmem>>, vector<8x128xf32>
    %32 = math.roundeven %31 : vector<8x128xf32>
    %cst_9 = arith.constant 0.000000e+00 : f32
    %cst_10 = arith.constant 4.000000e+00 : f32
    %33 = vector.broadcast %cst_9 : f32 to vector<8x128xf32>
    %34 = arith.maximumf %33, %32 : vector<8x128xf32>
    %35 = vector.broadcast %cst_10 : f32 to vector<8x128xf32>
    %36 = arith.minimumf %35, %34 : vector<8x128xf32>
    %37 = arith.index_cast %29 : i32 to index
    %c0_11 = arith.constant 0 : index
    %38 = vector.load %arg3[%37, %c0_11] : memref<56x128xf32, #tpu.memory_space<vmem>>, vector<8x128xf32>
    %39 = math.roundeven %38 : vector<8x128xf32>
    %cst_12 = arith.constant 0.000000e+00 : f32
    %cst_13 = arith.constant 4.000000e+00 : f32
    %40 = vector.broadcast %cst_12 : f32 to vector<8x128xf32>
    %41 = arith.maximumf %40, %39 : vector<8x128xf32>
    %42 = vector.broadcast %cst_13 : f32 to vector<8x128xf32>
    %43 = arith.minimumf %42, %41 : vector<8x128xf32>
    %44 = arith.addf %20, %36 : vector<8x128xf32>
    %45 = arith.addf %21, %43 : vector<8x128xf32>
    %46 = arith.mulf %36, %36 : vector<8x128xf32>
    %47 = arith.addf %23, %46 : vector<8x128xf32>
    %48 = arith.mulf %43, %43 : vector<8x128xf32>
    %49 = arith.addf %25, %48 : vector<8x128xf32>
    %50 = arith.mulf %36, %43 : vector<8x128xf32>
    %51 = arith.addf %27, %50 : vector<8x128xf32>
    %c2_i32 = arith.constant 2 : i32
    %c8_i32_14 = arith.constant 8 : i32
    %52 = arith.muli %c2_i32, %c8_i32_14 : i32
    %53 = tpu.assume_multiple %52, 8 : i32
    %54 = arith.index_cast %53 : i32 to index
    %c0_15 = arith.constant 0 : index
    %55 = vector.load %arg2[%54, %c0_15] : memref<56x128xf32, #tpu.memory_space<vmem>>, vector<8x128xf32>
    %56 = math.roundeven %55 : vector<8x128xf32>
    %cst_16 = arith.constant 0.000000e+00 : f32
    %cst_17 = arith.constant 4.000000e+00 : f32
    %57 = vector.broadcast %cst_16 : f32 to vector<8x128xf32>
    %58 = arith.maximumf %57, %56 : vector<8x128xf32>
    %59 = vector.broadcast %cst_17 : f32 to vector<8x128xf32>
    %60 = arith.minimumf %59, %58 : vector<8x128xf32>
    %61 = arith.index_cast %53 : i32 to index
    %c0_18 = arith.constant 0 : index
    %62 = vector.load %arg3[%61, %c0_18] : memref<56x128xf32, #tpu.memory_space<vmem>>, vector<8x128xf32>
    %63 = math.roundeven %62 : vector<8x128xf32>
    %cst_19 = arith.constant 0.000000e+00 : f32
    %cst_20 = arith.constant 4.000000e+00 : f32
    %64 = vector.broadcast %cst_19 : f32 to vector<8x128xf32>
    %65 = arith.maximumf %64, %63 : vector<8x128xf32>
    %66 = vector.broadcast %cst_20 : f32 to vector<8x128xf32>
    %67 = arith.minimumf %66, %65 : vector<8x128xf32>
    %68 = arith.addf %44, %60 : vector<8x128xf32>
    %69 = arith.addf %45, %67 : vector<8x128xf32>
    %70 = arith.mulf %60, %60 : vector<8x128xf32>
    %71 = arith.addf %47, %70 : vector<8x128xf32>
    %72 = arith.mulf %67, %67 : vector<8x128xf32>
    %73 = arith.addf %49, %72 : vector<8x128xf32>
    %74 = arith.mulf %60, %67 : vector<8x128xf32>
    %75 = arith.addf %51, %74 : vector<8x128xf32>
    %c3_i32 = arith.constant 3 : i32
    %c8_i32_21 = arith.constant 8 : i32
    %76 = arith.muli %c3_i32, %c8_i32_21 : i32
    %77 = tpu.assume_multiple %76, 8 : i32
    %78 = arith.index_cast %77 : i32 to index
    %c0_22 = arith.constant 0 : index
    %79 = vector.load %arg2[%78, %c0_22] : memref<56x128xf32, #tpu.memory_space<vmem>>, vector<8x128xf32>
    %80 = math.roundeven %79 : vector<8x128xf32>
    %cst_23 = arith.constant 0.000000e+00 : f32
    %cst_24 = arith.constant 4.000000e+00 : f32
    %81 = vector.broadcast %cst_23 : f32 to vector<8x128xf32>
    %82 = arith.maximumf %81, %80 : vector<8x128xf32>
    %83 = vector.broadcast %cst_24 : f32 to vector<8x128xf32>
    %84 = arith.minimumf %83, %82 : vector<8x128xf32>
    %85 = arith.index_cast %77 : i32 to index
    %c0_25 = arith.constant 0 : index
    %86 = vector.load %arg3[%85, %c0_25] : memref<56x128xf32, #tpu.memory_space<vmem>>, vector<8x128xf32>
    %87 = math.roundeven %86 : vector<8x128xf32>
    %cst_26 = arith.constant 0.000000e+00 : f32
    %cst_27 = arith.constant 4.000000e+00 : f32
    %88 = vector.broadcast %cst_26 : f32 to vector<8x128xf32>
    %89 = arith.maximumf %88, %87 : vector<8x128xf32>
    %90 = vector.broadcast %cst_27 : f32 to vector<8x128xf32>
    %91 = arith.minimumf %90, %89 : vector<8x128xf32>
    %92 = arith.addf %68, %84 : vector<8x128xf32>
    %93 = arith.addf %69, %91 : vector<8x128xf32>
    %94 = arith.mulf %84, %84 : vector<8x128xf32>
    %95 = arith.addf %71, %94 : vector<8x128xf32>
    %96 = arith.mulf %91, %91 : vector<8x128xf32>
    %97 = arith.addf %73, %96 : vector<8x128xf32>
    %98 = arith.mulf %84, %91 : vector<8x128xf32>
    %99 = arith.addf %75, %98 : vector<8x128xf32>
    %c4_i32 = arith.constant 4 : i32
    %c8_i32_28 = arith.constant 8 : i32
    %100 = arith.muli %c4_i32, %c8_i32_28 : i32
    %101 = tpu.assume_multiple %100, 8 : i32
    %102 = arith.index_cast %101 : i32 to index
    %c0_29 = arith.constant 0 : index
    %103 = vector.load %arg2[%102, %c0_29] : memref<56x128xf32, #tpu.memory_space<vmem>>, vector<8x128xf32>
    %104 = math.roundeven %103 : vector<8x128xf32>
    %cst_30 = arith.constant 0.000000e+00 : f32
    %cst_31 = arith.constant 4.000000e+00 : f32
    %105 = vector.broadcast %cst_30 : f32 to vector<8x128xf32>
    %106 = arith.maximumf %105, %104 : vector<8x128xf32>
    %107 = vector.broadcast %cst_31 : f32 to vector<8x128xf32>
    %108 = arith.minimumf %107, %106 : vector<8x128xf32>
    %109 = arith.index_cast %101 : i32 to index
    %c0_32 = arith.constant 0 : index
    %110 = vector.load %arg3[%109, %c0_32] : memref<56x128xf32, #tpu.memory_space<vmem>>, vector<8x128xf32>
    %111 = math.roundeven %110 : vector<8x128xf32>
    %cst_33 = arith.constant 0.000000e+00 : f32
    %cst_34 = arith.constant 4.000000e+00 : f32
    %112 = vector.broadcast %cst_33 : f32 to vector<8x128xf32>
    %113 = arith.maximumf %112, %111 : vector<8x128xf32>
    %114 = vector.broadcast %cst_34 : f32 to vector<8x128xf32>
    %115 = arith.minimumf %114, %113 : vector<8x128xf32>
    %116 = arith.addf %92, %108 : vector<8x128xf32>
    %117 = arith.addf %93, %115 : vector<8x128xf32>
    %118 = arith.mulf %108, %108 : vector<8x128xf32>
    %119 = arith.addf %95, %118 : vector<8x128xf32>
    %120 = arith.mulf %115, %115 : vector<8x128xf32>
    %121 = arith.addf %97, %120 : vector<8x128xf32>
    %122 = arith.mulf %108, %115 : vector<8x128xf32>
    %123 = arith.addf %99, %122 : vector<8x128xf32>
    %c5_i32 = arith.constant 5 : i32
    %c8_i32_35 = arith.constant 8 : i32
    %124 = arith.muli %c5_i32, %c8_i32_35 : i32
    %125 = tpu.assume_multiple %124, 8 : i32
    %126 = arith.index_cast %125 : i32 to index
    %c0_36 = arith.constant 0 : index
    %127 = vector.load %arg2[%126, %c0_36] : memref<56x128xf32, #tpu.memory_space<vmem>>, vector<8x128xf32>
    %128 = math.roundeven %127 : vector<8x128xf32>
    %cst_37 = arith.constant 0.000000e+00 : f32
    %cst_38 = arith.constant 4.000000e+00 : f32
    %129 = vector.broadcast %cst_37 : f32 to vector<8x128xf32>
    %130 = arith.maximumf %129, %128 : vector<8x128xf32>
    %131 = vector.broadcast %cst_38 : f32 to vector<8x128xf32>
    %132 = arith.minimumf %131, %130 : vector<8x128xf32>
    %133 = arith.index_cast %125 : i32 to index
    %c0_39 = arith.constant 0 : index
    %134 = vector.load %arg3[%133, %c0_39] : memref<56x128xf32, #tpu.memory_space<vmem>>, vector<8x128xf32>
    %135 = math.roundeven %134 : vector<8x128xf32>
    %cst_40 = arith.constant 0.000000e+00 : f32
    %cst_41 = arith.constant 4.000000e+00 : f32
    %136 = vector.broadcast %cst_40 : f32 to vector<8x128xf32>
    %137 = arith.maximumf %136, %135 : vector<8x128xf32>
    %138 = vector.broadcast %cst_41 : f32 to vector<8x128xf32>
    %139 = arith.minimumf %138, %137 : vector<8x128xf32>
    %140 = arith.addf %116, %132 : vector<8x128xf32>
    %141 = arith.addf %117, %139 : vector<8x128xf32>
    %142 = arith.mulf %132, %132 : vector<8x128xf32>
    %143 = arith.addf %119, %142 : vector<8x128xf32>
    %144 = arith.mulf %139, %139 : vector<8x128xf32>
    %145 = arith.addf %121, %144 : vector<8x128xf32>
    %146 = arith.mulf %132, %139 : vector<8x128xf32>
    %147 = arith.addf %123, %146 : vector<8x128xf32>
    %c6_i32 = arith.constant 6 : i32
    %c8_i32_42 = arith.constant 8 : i32
    %148 = arith.muli %c6_i32, %c8_i32_42 : i32
    %149 = tpu.assume_multiple %148, 8 : i32
    %150 = arith.index_cast %149 : i32 to index
    %c0_43 = arith.constant 0 : index
    %151 = vector.load %arg2[%150, %c0_43] : memref<56x128xf32, #tpu.memory_space<vmem>>, vector<8x128xf32>
    %152 = math.roundeven %151 : vector<8x128xf32>
    %cst_44 = arith.constant 0.000000e+00 : f32
    %cst_45 = arith.constant 4.000000e+00 : f32
    %153 = vector.broadcast %cst_44 : f32 to vector<8x128xf32>
    %154 = arith.maximumf %153, %152 : vector<8x128xf32>
    %155 = vector.broadcast %cst_45 : f32 to vector<8x128xf32>
    %156 = arith.minimumf %155, %154 : vector<8x128xf32>
    %157 = arith.index_cast %149 : i32 to index
    %c0_46 = arith.constant 0 : index
    %158 = vector.load %arg3[%157, %c0_46] : memref<56x128xf32, #tpu.memory_space<vmem>>, vector<8x128xf32>
    %159 = math.roundeven %158 : vector<8x128xf32>
    %cst_47 = arith.constant 0.000000e+00 : f32
    %cst_48 = arith.constant 4.000000e+00 : f32
    %160 = vector.broadcast %cst_47 : f32 to vector<8x128xf32>
    %161 = arith.maximumf %160, %159 : vector<8x128xf32>
    %162 = vector.broadcast %cst_48 : f32 to vector<8x128xf32>
    %163 = arith.minimumf %162, %161 : vector<8x128xf32>
    %164 = arith.addf %140, %156 : vector<8x128xf32>
    %165 = arith.addf %141, %163 : vector<8x128xf32>
    %166 = arith.mulf %156, %156 : vector<8x128xf32>
    %167 = arith.addf %143, %166 : vector<8x128xf32>
    %168 = arith.mulf %163, %163 : vector<8x128xf32>
    %169 = arith.addf %145, %168 : vector<8x128xf32>
    %170 = arith.mulf %156, %163 : vector<8x128xf32>
    %171 = arith.addf %147, %170 : vector<8x128xf32>
    %c7_i32 = arith.constant 7 : i32
    %c0_49 = arith.constant 0 : index
    %c0_50 = arith.constant 0 : index
    %c0_51 = arith.constant 0 : index
    %c0_52 = arith.constant 0 : index
    %172 = vector.load %arg4[%c0_49, %c0_50, %c0_51, %c0_52] : memref<1x5x8x128xf32, #tpu.memory_space<vmem>>, vector<1x1x8x128xf32>
    %173 = vector.shape_cast %172 : vector<1x1x8x128xf32> to vector<8x128xf32>
    %174 = arith.addf %173, %164 : vector<8x128xf32>
    %c0_53 = arith.constant 0 : index
    %c0_54 = arith.constant 0 : index
    %c0_55 = arith.constant 0 : index
    %c0_56 = arith.constant 0 : index
    %175 = vector.load %arg4[%c0_53, %c0_54, %c0_55, %c0_56] : memref<1x5x8x128xf32, #tpu.memory_space<vmem>>, vector<1x1x8x128xf32>
    %176 = vector.shape_cast %175 : vector<1x1x8x128xf32> to vector<8x128xf32>
    %177 = vector.shape_cast %174 : vector<8x128xf32> to vector<1x1x8x128xf32>
    tpu.vector_store %arg4[%c0_53, %c0_54, %c0_55, %c0_56], %177 {strides = array<i32>} : memref<1x5x8x128xf32, #tpu.memory_space<vmem>>, vector<1x1x8x128xf32>,
    %c0_57 = arith.constant 0 : index
    %c1 = arith.constant 1 : index
    %c0_58 = arith.constant 0 : index
    %c0_59 = arith.constant 0 : index
    %178 = vector.load %arg4[%c0_57, %c1, %c0_58, %c0_59] : memref<1x5x8x128xf32, #tpu.memory_space<vmem>>, vector<1x1x8x128xf32>
    %179 = vector.shape_cast %178 : vector<1x1x8x128xf32> to vector<8x128xf32>
    %180 = arith.addf %179, %165 : vector<8x128xf32>
    %c0_60 = arith.constant 0 : index
    %c1_61 = arith.constant 1 : index
    %c0_62 = arith.constant 0 : index
    %c0_63 = arith.constant 0 : index
    %181 = vector.load %arg4[%c0_60, %c1_61, %c0_62, %c0_63] : memref<1x5x8x128xf32, #tpu.memory_space<vmem>>, vector<1x1x8x128xf32>
    %182 = vector.shape_cast %181 : vector<1x1x8x128xf32> to vector<8x128xf32>
    %183 = vector.shape_cast %180 : vector<8x128xf32> to vector<1x1x8x128xf32>
    tpu.vector_store %arg4[%c0_60, %c1_61, %c0_62, %c0_63], %183 {strides = array<i32>} : memref<1x5x8x128xf32, #tpu.memory_space<vmem>>, vector<1x1x8x128xf32>,
    %c0_64 = arith.constant 0 : index
    %c2 = arith.constant 2 : index
    %c0_65 = arith.constant 0 : index
    %c0_66 = arith.constant 0 : index
    %184 = vector.load %arg4[%c0_64, %c2, %c0_65, %c0_66] : memref<1x5x8x128xf32, #tpu.memory_space<vmem>>, vector<1x1x8x128xf32>
    %185 = vector.shape_cast %184 : vector<1x1x8x128xf32> to vector<8x128xf32>
    %186 = arith.addf %185, %167 : vector<8x128xf32>
    %c0_67 = arith.constant 0 : index
    %c2_68 = arith.constant 2 : index
    %c0_69 = arith.constant 0 : index
    %c0_70 = arith.constant 0 : index
    %187 = vector.load %arg4[%c0_67, %c2_68, %c0_69, %c0_70] : memref<1x5x8x128xf32, #tpu.memory_space<vmem>>, vector<1x1x8x128xf32>
    %188 = vector.shape_cast %187 : vector<1x1x8x128xf32> to vector<8x128xf32>
    %189 = vector.shape_cast %186 : vector<8x128xf32> to vector<1x1x8x128xf32>
    tpu.vector_store %arg4[%c0_67, %c2_68, %c0_69, %c0_70], %189 {strides = array<i32>} : memref<1x5x8x128xf32, #tpu.memory_space<vmem>>, vector<1x1x8x128xf32>,
    %c0_71 = arith.constant 0 : index
    %c3 = arith.constant 3 : index
    %c0_72 = arith.constant 0 : index
    %c0_73 = arith.constant 0 : index
    %190 = vector.load %arg4[%c0_71, %c3, %c0_72, %c0_73] : memref<1x5x8x128xf32, #tpu.memory_space<vmem>>, vector<1x1x8x128xf32>
    %191 = vector.shape_cast %190 : vector<1x1x8x128xf32> to vector<8x128xf32>
    %192 = arith.addf %191, %169 : vector<8x128xf32>
    %c0_74 = arith.constant 0 : index
    %c3_75 = arith.constant 3 : index
    %c0_76 = arith.constant 0 : index
    %c0_77 = arith.constant 0 : index
    %193 = vector.load %arg4[%c0_74, %c3_75, %c0_76, %c0_77] : memref<1x5x8x128xf32, #tpu.memory_space<vmem>>, vector<1x1x8x128xf32>
    %194 = vector.shape_cast %193 : vector<1x1x8x128xf32> to vector<8x128xf32>
    %195 = vector.shape_cast %192 : vector<8x128xf32> to vector<1x1x8x128xf32>
    tpu.vector_store %arg4[%c0_74, %c3_75, %c0_76, %c0_77], %195 {strides = array<i32>} : memref<1x5x8x128xf32, #tpu.memory_space<vmem>>, vector<1x1x8x128xf32>,
    %c0_78 = arith.constant 0 : index
    %c4 = arith.constant 4 : index
    %c0_79 = arith.constant 0 : index
    %c0_80 = arith.constant 0 : index
    %196 = vector.load %arg4[%c0_78, %c4, %c0_79, %c0_80] : memref<1x5x8x128xf32, #tpu.memory_space<vmem>>, vector<1x1x8x128xf32>
    %197 = vector.shape_cast %196 : vector<1x1x8x128xf32> to vector<8x128xf32>
    %198 = arith.addf %197, %171 : vector<8x128xf32>
    %c0_81 = arith.constant 0 : index
    %c4_82 = arith.constant 4 : index
    %c0_83 = arith.constant 0 : index
    %c0_84 = arith.constant 0 : index
    %199 = vector.load %arg4[%c0_81, %c4_82, %c0_83, %c0_84] : memref<1x5x8x128xf32, #tpu.memory_space<vmem>>, vector<1x1x8x128xf32>
    %200 = vector.shape_cast %199 : vector<1x1x8x128xf32> to vector<8x128xf32>
    %201 = vector.shape_cast %198 : vector<8x128xf32> to vector<1x1x8x128xf32>
    tpu.vector_store %arg4[%c0_81, %c4_82, %c0_83, %c0_84], %201 {strides = array<i32>} : memref<1x5x8x128xf32, #tpu.memory_space<vmem>>, vector<1x1x8x128xf32>,
    return
  }
  func.func @transform_0(%arg0: i32, %arg1: i32) -> (i32, i32) {
    %c1_i32 = arith.constant 1 : i32
    %0 = arith.muli %arg0, %c1_i32 : i32
    %1 = arith.addi %0, %arg1 : i32
    %c0_i32 = arith.constant 0 : i32
    %c0_i32_0 = arith.constant 0 : i32
    return %1, %c0_i32 : i32, i32
  }
  func.func @transform_1(%arg0: i32, %arg1: i32) -> (i32, i32) {
    %c1_i32 = arith.constant 1 : i32
    %0 = arith.muli %arg0, %c1_i32 : i32
    %1 = arith.addi %0, %arg1 : i32
    %c0_i32 = arith.constant 0 : i32
    %c0_i32_0 = arith.constant 0 : i32
    return %1, %c0_i32 : i32, i32
  }
  func.func @transform_2(%arg0: i32, %arg1: i32) -> (i32, i32, i32, i32) {
    %c0_i32 = arith.constant 0 : i32
    %c0_i32_0 = arith.constant 0 : i32
    %c0_i32_1 = arith.constant 0 : i32
    %c0_i32_2 = arith.constant 0 : i32
    return %arg0, %c0_i32, %c0_i32_0, %c0_i32_1 : i32, i32, i32, i32
  }
}

</mosaic_0001>

<llo_original>
// kernel: tpu_custom_call.1
$region0: #{tpu_custom_call.1}
  #allocation0 [shape = 'u32[]', space=smem, size = 0x4, offset = 0x4, fixed_abs, tag = 'smem constant byte address 0x4 - core index']
  #allocation1 [shape = 'u32[144,128]{1,0:T(1,128)}', space=vmem, size = 0x12000, scoped, tag = 'internal scratch']
  %s0 = inlined_call_operand.hbm [shape: f32[63,128], index: 0, kind: input, shape index: {}]
  %s1 = inlined_call_operand.hbm [shape: f32[63,128], index: 1, kind: input, shape index: {}]
  %s2 = inlined_call_operand.hbm [shape: f32[1,5,8,128], index: 2, kind: output, shape index: {}]
  %s3 = sld [smem:[#allocation0]]
  $region30: #{tpu_custom_call.1} parent=0
    _
  %s5 = ssub.s32 1, %s3
  %s6 = scalar_select 0, %s5, %s3
  $region1: #{tpu_custom_call.1} parent=0
    #allocation2 [shape = 'u8[28672]{0}', space=vmem, size = 0x7000, scoped, tag = 'input window, operand 0, single buffered']
    #allocation3 [shape = 's32[1]{0}', space=sflag, size = 0x4, scoped, tag = 'scoped memory for tpu_custom_call.1']
    #allocation4 [shape = 's32[1]{0}', space=sflag, size = 0x4, scoped, tag = 'scoped memory for tpu_custom_call.1']
    #allocation5 [shape = 'u8[28672]{0}', space=vmem, size = 0x7000, scoped, tag = 'input window, operand 1, single buffered']
    #allocation6 [shape = 's32[1]{0}', space=sflag, size = 0x4, scoped, tag = 'scoped memory for tpu_custom_call.1']
    #allocation7 [shape = 'u8[20480]{0}', space=vmem, size = 0x5000, scoped, tag = 'output window, operand 0, single buffered']
    %7 = vsyncpa [#allocation3], 0
    %8 = vsyncpa [#allocation6], 0
    %9 = vsyncpa [#allocation4], 0
    // Predicated region
    $region2: #{tpu_custom_call.1} parent=1 // pred_check
      _
    $region3: #{tpu_custom_call.1} parent=1 // pred_check_branch
      %11 = sbr.rel (0) target = $region5
    $region4: #{tpu_custom_call.1} parent=1 // pred_region
      %s12 = sadd.s32 0, 0
      %s13 = smul.u32 7, %s12
      %s14 = ssub.s32 8, %s13
      %p15 = scmp.lt.s32.totalorder %s14, 7
      %s16 = scalar_select %p15, %s14, 7
      %s17 = smul.u32 128, %s16
      %s19 = ssub.s32 896, %s17
      %20 = vsyncadd [#allocation3], %s19
      %p21 = scmp.ne.s32.totalorder 0, %s17
      %s22 = smul.addr %s13, 128
      %s23 = scalar_lea.hbm %s0, %s22
      %s24 = smul.u32 8, %s16
      %s25 = sshll.u32 [#allocation2], 4
      %s26 = int_to_ptr.vmem [resolvable:$true] %s25
      %s27 = sshll.u32 %s24, 4
      %31 = dma.hbm_to_vmem [thread:$0]  (%p21), %s23, %s27, %s26, [#allocation3], 128, 128, 8
    $region5: #{tpu_custom_call.1} parent=1 // pred_fallthru
      _
    // Predicated region
    $region6: #{tpu_custom_call.1} parent=1 // pred_check
      _
    $region7: #{tpu_custom_call.1} parent=1 // pred_check_branch
      %33 = sbr.rel (0) target = $region9
    $region8: #{tpu_custom_call.1} parent=1 // pred_region
      %s34 = sadd.s32 0, 0
      %s35 = smul.u32 7, %s34
      %s36 = ssub.s32 8, %s35
      %p37 = scmp.lt.s32.totalorder %s36, 7
      %s38 = scalar_select %p37, %s36, 7
      %s39 = smul.u32 128, %s38
      %s41 = ssub.s32 896, %s39
      %42 = vsyncadd [#allocation6], %s41
      %p43 = scmp.ne.s32.totalorder 0, %s39
      %s44 = smul.addr %s35, 128
      %s45 = scalar_lea.hbm %s1, %s44
      %s46 = smul.u32 8, %s38
      %s47 = sshll.u32 [#allocation5], 4
      %s48 = int_to_ptr.vmem [resolvable:$true] %s47
      %s49 = sshll.u32 %s46, 4
      %53 = dma.hbm_to_vmem [thread:$0]  (%p43), %s45, %s49, %s48, [#allocation6], 128, 128, 8
    $region9: #{tpu_custom_call.1} parent=1 // pred_fallthru
      _
    // Predicated region
    $region10: #{tpu_custom_call.1} parent=1 // pred_check
      _
    $region11: #{tpu_custom_call.1} parent=1 // pred_check_branch
      %55 = sbr.rel (0) target = $region13
    $region12: #{tpu_custom_call.1} parent=1 // pred_region
      %56 = dma.done [#allocation3], 896
    $region13: #{tpu_custom_call.1} parent=1 // pred_fallthru
      _
    // Predicated region
    $region14: #{tpu_custom_call.1} parent=1 // pred_check
      _
    $region15: #{tpu_custom_call.1} parent=1 // pred_check_branch
      %58 = sbr.rel (0) target = $region17
    $region16: #{tpu_custom_call.1} parent=1 // pred_region
      %59 = dma.done [#allocation6], 896
    $region17: #{tpu_custom_call.1} parent=1 // pred_fallthru
      _
    %s60 = sadd.s32 0, 0
    %s61 = smul.u32 7, %s60
    %s62 = ssub.s32 8, %s61
    %p63 = scmp.lt.s32.totalorder %s62, 7
    %s64 = scalar_select %p63, %s62, 7
    %s65 = smul.u32 128, %s64
    %s66 = sadd.s32 0, 0
    %s67 = smul.u32 7, %s66
    %s68 = ssub.s32 8, %s67
    %p69 = scmp.lt.s32.totalorder %s68, 7
    %s70 = scalar_select %p69, %s68, 7
    %s71 = smul.u32 128, %s70
    %p72 = scmp.eq.s32.totalorder 0, 0
    // Predicated region
    $region18: #{tpu_custom_call.1} parent=1 // pred_check
      %p73 = pneg %p72
    $region19: #{tpu_custom_call.1} parent=1 // pred_check_branch
      %75 = sbr.rel (%p73) target = $region21
    $region20: #{tpu_custom_call.1} parent=1 // pred_region
      %76 = vst [vmem:[#allocation7] sm:$0xff] 0.0
      %77 = vst [vmem:[#allocation7 + $0x8] sm:$0xff] 0.0
      %78 = vst [vmem:[#allocation7 + $0x10] sm:$0xff] 0.0
      %79 = vst [vmem:[#allocation7 + $0x18] sm:$0xff] 0.0
      %80 = vst [vmem:[#allocation7 + $0x20] sm:$0xff] 0.0
    $region21: #{tpu_custom_call.1} parent=1 // pred_fallthru
      _
    %v81 = vld [vmem:[#allocation2] sm:$0xff]
    %v82 = vround.ne.pseudo %v81
    %v83 = vmax.f32 %v82, 0.0
    %v84 = vmin.f32 %v83, 4.0
    %v85 = vld [vmem:[#allocation5] sm:$0xff]
    %v86 = vround.ne.pseudo %v85
    %v87 = vmax.f32 %v86, 0.0
    %v88 = vmin.f32 %v87, 4.0
    %v89 = vadd.f32 %v84, 0.0
    %v90 = vadd.f32 %v88, 0.0
    %v91 = vmul.f32 %v84, %v84
    %v92 = vadd.f32 %v91, 0.0
    %v93 = vmul.f32 %v88, %v88
    %v94 = vadd.f32 %v93, 0.0
    %v95 = vmul.f32 %v84, %v88
    %v96 = vadd.f32 %v95, 0.0
    %s97 = scalar_lea.vmem [#allocation2], 8
    %v98 = vld [vmem:[%s97] sm:$0xff]
    %v99 = vround.ne.pseudo %v98
    %v100 = vmax.f32 %v99, 0.0
    %v101 = vmin.f32 %v100, 4.0
    %s102 = scalar_lea.vmem [#allocation5], 8
    %v103 = vld [vmem:[%s102] sm:$0xff]
    %v104 = vround.ne.pseudo %v103
    %v105 = vmax.f32 %v104, 0.0
    %v106 = vmin.f32 %v105, 4.0
    %v107 = vadd.f32 %v89, %v101
    %v108 = vadd.f32 %v90, %v106
    %v109 = vmul.f32 %v101, %v101
    %v110 = vadd.f32 %v92, %v109
    %v111 = vmul.f32 %v106, %v106
    %v112 = vadd.f32 %v94, %v111
    %v113 = vmul.f32 %v101, %v106
    %v114 = vadd.f32 %v96, %v113
    %s115 = scalar_lea.vmem [#allocation2], 16
    %v116 = vld [vmem:[%s115] sm:$0xff]
    %v117 = vround.ne.pseudo %v116
    %v118 = vmax.f32 %v117, 0.0
    %v119 = vmin.f32 %v118, 4.0
    %s120 = scalar_lea.vmem [#allocation5], 16
    %v121 = vld [vmem:[%s120] sm:$0xff]
    %v122 = vround.ne.pseudo %v121
    %v123 = vmax.f32 %v122, 0.0
    %v124 = vmin.f32 %v123, 4.0
    %v125 = vadd.f32 %v107, %v119
    %v126 = vadd.f32 %v108, %v124
    %v127 = vmul.f32 %v119, %v119
    %v128 = vadd.f32 %v110, %v127
    %v129 = vmul.f32 %v124, %v124
    %v130 = vadd.f32 %v112, %v129
    %v131 = vmul.f32 %v119, %v124
    %v132 = vadd.f32 %v114, %v131
    %s133 = scalar_lea.vmem [#allocation2], 24
    %v134 = vld [vmem:[%s133] sm:$0xff]
    %v135 = vround.ne.pseudo %v134
    %v136 = vmax.f32 %v135, 0.0
    %v137 = vmin.f32 %v136, 4.0
    %s138 = scalar_lea.vmem [#allocation5], 24
    %v139 = vld [vmem:[%s138] sm:$0xff]
    %v140 = vround.ne.pseudo %v139
    %v141 = vmax.f32 %v140, 0.0
    %v142 = vmin.f32 %v141, 4.0
    %v143 = vadd.f32 %v125, %v137
    %v144 = vadd.f32 %v126, %v142
    %v145 = vmul.f32 %v137, %v137
    %v146 = vadd.f32 %v128, %v145
    %v147 = vmul.f32 %v142, %v142
    %v148 = vadd.f32 %v130, %v147
    %v149 = vmul.f32 %v137, %v142
    %v150 = vadd.f32 %v132, %v149
    %s151 = scalar_lea.vmem [#allocation2], 32
    %v152 = vld [vmem:[%s151] sm:$0xff]
    %v153 = vround.ne.pseudo %v152
    %v154 = vmax.f32 %v153, 0.0
    %v155 = vmin.f32 %v154, 4.0
    %s156 = scalar_lea.vmem [#allocation5], 32
    %v157 = vld [vmem:[%s156] sm:$0xff]
    %v158 = vround.ne.pseudo %v157
    %v159 = vmax.f32 %v158, 0.0
    %v160 = vmin.f32 %v159, 4.0
    %v161 = vadd.f32 %v143, %v155
    %v162 = vadd.f32 %v144, %v160
    %v163 = vmul.f32 %v155, %v155
    %v164 = vadd.f32 %v146, %v163
    %v165 = vmul.f32 %v160, %v160
    %v166 = vadd.f32 %v148, %v165
    %v167 = vmul.f32 %v155, %v160
    %v168 = vadd.f32 %v150, %v167
    %s169 = scalar_lea.vmem [#allocation2], 40
    %v170 = vld [vmem:[%s169] sm:$0xff]
    %v171 = vround.ne.pseudo %v170
    %v172 = vmax.f32 %v171, 0.0
    %v173 = vmin.f32 %v172, 4.0
    %s174 = scalar_lea.vmem [#allocation5], 40
    %v175 = vld [vmem:[%s174] sm:$0xff]
    %v176 = vround.ne.pseudo %v175
    %v177 = vmax.f32 %v176, 0.0
    %v178 = vmin.f32 %v177, 4.0
    %v179 = vadd.f32 %v161, %v173
    %v180 = vadd.f32 %v162, %v178
    %v181 = vmul.f32 %v173, %v173
    %v182 = vadd.f32 %v164, %v181
    %v183 = vmul.f32 %v178, %v178
    %v184 = vadd.f32 %v166, %v183
    %v185 = vmul.f32 %v173, %v178
    %v186 = vadd.f32 %v168, %v185
    %s187 = scalar_lea.vmem [#allocation2], 48
    %v188 = vld [vmem:[%s187] sm:$0xff]
    %v189 = vround.ne.pseudo %v188
    %v190 = vmax.f32 %v189, 0.0
    %v191 = vmin.f32 %v190, 4.0
    %s192 = scalar_lea.vmem [#allocation5], 48
    %v193 = vld [vmem:[%s192] sm:$0xff]
    %v194 = vround.ne.pseudo %v193
    %v195 = vmax.f32 %v194, 0.0
    %v196 = vmin.f32 %v195, 4.0
    %v197 = vadd.f32 %v179, %v191
    %v198 = vadd.f32 %v180, %v196
    %v199 = vmul.f32 %v191, %v191
    %v200 = vadd.f32 %v182, %v199
    %v201 = vmul.f32 %v196, %v196
    %v202 = vadd.f32 %v184, %v201
    %v203 = vmul.f32 %v191, %v196
    %v204 = vadd.f32 %v186, %v203
    %v205 = vld [vmem:[#allocation7] sm:$0xff]
    %v206 = vadd.f32 %v205, %v197
    %207 = vst [vmem:[#allocation7] sm:$0xff] %v206
    %s208 = scalar_lea.vmem [#allocation7], 8
    %v209 = vld [vmem:[%s208] sm:$0xff]
    %v210 = vadd.f32 %v209, %v198
    %211 = vst [vmem:[%s208] sm:$0xff] %v210
    %s212 = scalar_lea.vmem [#allocation7], 16
    %v213 = vld [vmem:[%s212] sm:$0xff]
    %v214 = vadd.f32 %v213, %v200
    %215 = vst [vmem:[%s212] sm:$0xff] %v214
    %s216 = scalar_lea.vmem [#allocation7], 24
    %v217 = vld [vmem:[%s216] sm:$0xff]
    %v218 = vadd.f32 %v217, %v202
    %219 = vst [vmem:[%s216] sm:$0xff] %v218
    %s220 = scalar_lea.vmem [#allocation7], 32
    %v221 = vld [vmem:[%s220] sm:$0xff]
    %v222 = vadd.f32 %v221, %v204
    %223 = vst [vmem:[%s220] sm:$0xff] %v222
    // Predicated region
    $region22: #{tpu_custom_call.1} parent=1 // pred_check
      _
    $region23: #{tpu_custom_call.1} parent=1 // pred_check_branch
      %225 = sbr.rel (0) target = $region25
    $region24: #{tpu_custom_call.1} parent=1 // pred_region
      %s227 = ssub.s32 640, 640
      %228 = vsyncadd [#allocation4], %s227
      %s229 = sshll.u32 [#allocation7], 4
      %s230 = int_to_ptr.vmem [resolvable:$true] %s229
      %235 = dma.vmem_to_hbm [thread:$0]  %s230, 640, %s2, [#allocation4], 128, 128, 8
    $region25: #{tpu_custom_call.1} parent=1 // pred_fallthru
      _
    // Predicated region
    $region26: #{tpu_custom_call.1} parent=1 // pred_check
      _
    $region27: #{tpu_custom_call.1} parent=1 // pred_check_branch
      %237 = sbr.rel (0) target = $region29
    $region28: #{tpu_custom_call.1} parent=1 // pred_region
      %238 = dma.done [#allocation4], 640
    $region29: #{tpu_custom_call.1} parent=1 // pred_fallthru
      _
    %239 = vsyncpa [#allocation3], 1
    %240 = vsyncpa [#allocation6], 1
    %241 = vsyncpa [#allocation4], 1

</llo_original>
